<compile_context>
chip_gen: v7x
topology: tpu7x:2x2x1
jax: 0.10.0
libtpu: 0.0.40
codegen_flags: <defaults>
</compile_context>

<pallas_src>
import jax
import jax.numpy as jnp
from jax.experimental import pallas as pl
from jax.experimental.pallas import tpu as pltpu

# ---- quantizer configuration (matches LsqQuantizer(bit=8, level='L', ptq=False)) ----
BIT = 8
THD_NEG = float(-(2 ** (BIT - 1)))       # -128
THD_POS = float(2 ** (BIT - 1) - 1)      #  127


def _device_kind() -> str:
    try:
        return jax.devices()[0].device_kind.lower()
    except Exception:  # pragma: no cover - defensive
        return ""


_KIND = _device_kind()
if "v7" in _KIND or "7x" in _KIND:
    _TILE_ROWS = 4096            # 8 MiB f32 tile at lane=512 (v7x: 3.2 TB/s, 64 MiB VMEM)
    _FALLBACK_ELEMS = 1 << 18
elif "v6" in _KIND:
    _TILE_ROWS = 2048            # 4 MiB tile (fits v6e's 32 MiB scoped-VMEM default)
    _FALLBACK_ELEMS = 1 << 16
else:                            # v5e and older / unknown: conservative
    _TILE_ROWS = 1024            # 2 MiB tile (8 MiB resident under 16 MiB scoped default)
    _FALLBACK_ELEMS = 1 << 16


def _lsq_kernel(s_ref, x_ref, o_ref):
    # s_ref: (1,) scalar step size in SMEM
    # x_ref / o_ref: (tm, lane) tile in VMEM
    s = s_ref[0]
    # True division (not x * reciprocal) keeps .5 rounding boundaries bit-exact
    # vs the x / s reference; the kernel is HBM-bound on v5e/v6e so this is free.
    xs = x_ref[...] / s
    o_ref[...] = jnp.round(jnp.clip(xs, THD_NEG, THD_POS)) * s


def _lsq_reference(x, s):
    return jnp.round(jnp.clip(x / s[0], THD_NEG, THD_POS)) * s[0]


def _round_up(v, m):
    return (v + m - 1) // m * m


def _lsq_pallas_2d(x2d: jax.Array, s: jax.Array, tile_rows: int) -> jax.Array:
    """Run the kernel over a lane-dense (rows, lane) f32 view."""
    rows, lane = x2d.shape
    # Keep tile bytes roughly constant independent of lane width.
    tm_target = max(8, tile_rows * 512 // lane)
    if rows <= tm_target:
        tm = rows                    # single block == full array (no (8,128) constraint)
    else:
        tm = tm_target               # multiple of 8; ragged last block masked by Pallas

    grid = (pl.cdiv(rows, tm),)
    resident_bytes = 2 * 2 * tm * lane * 4     # 2 specs x 2 buffers x tile
    vmem_limit = resident_bytes + (8 << 20)

    return pl.pallas_call(
        _lsq_kernel,
        out_shape=jax.ShapeDtypeStruct(x2d.shape, x2d.dtype),
        grid=grid,
        in_specs=[
            pl.BlockSpec(memory_space=pltpu.MemorySpace.SMEM),   # s (scalar step size)
            pl.BlockSpec((tm, lane), lambda i: (i, 0)),          # x row-tile
        ],
        out_specs=pl.BlockSpec((tm, lane), lambda i: (i, 0)),
        compiler_params=pltpu.CompilerParams(
            dimension_semantics=("parallel",),
            vmem_limit_bytes=vmem_limit,
        ),
        cost_estimate=pl.CostEstimate(
            flops=5 * rows * lane,
            transcendentals=0,
            bytes_accessed=8 * rows * lane,
        ),
    )(s, x2d)


def lsq_quantize(x_nchw: jax.Array, s: jax.Array, *,
                 force_pallas: bool = False, tile_rows: int | None = None) -> jax.Array:
    """Forward pass of LsqQuantizer (per-layer scale).

    x_nchw : (N, C, H, W) float32 activation
    s      : (1,) float32 step-size parameter
    """
    orig_shape = x_nchw.shape
    numel = x_nchw.size
    tile_rows = _TILE_ROWS if tile_rows is None else tile_rows

    # Tiny activations: custom-call + per-step overhead dominates; let XLA fuse.
    if numel < _FALLBACK_ELEMS and not force_pallas:
        return _lsq_reference(x_nchw, s)

    # Pick the widest lane (multiple of 128) that divides numel -> zero-copy view,
    # no pad, no output slice.
    lane = None
    for cand in (512, 256, 128):
        if numel % cand == 0:
            lane = cand
            break

    if lane is not None:
        x2d = x_nchw.reshape(numel // lane, lane)
        out2d = _lsq_pallas_2d(x2d, s, tile_rows)
        return out2d.reshape(orig_shape)

    # Rare ragged case (numel not a multiple of 128): pad the flat view to a lane
    # multiple and slice back.  Pad zeros quantize to 0 and are discarded.
    # TODO(synk): fuse the pad via CompilerParams(allow_input_fusion=...) to avoid
    # the extra HBM round-trip in this fallback.
    lane = 512
    padded_len = _round_up(numel, lane)
    flat = jnp.pad(x_nchw.reshape(-1), (0, padded_len - numel))
    out2d = _lsq_pallas_2d(flat.reshape(padded_len // lane, lane), s, tile_rows)
    return out2d.reshape(-1)[:numel].reshape(orig_shape)


if __name__ == "__main__":
    key = jax.random.PRNGKey(0)
    # Small NCHW input consistent with a conv activation quantizer.
    x = jax.random.normal(key, (2, 4, 16, 16), dtype=jnp.float32) * 3.0

    # Parameter from __init__: self.s = nn.Parameter(torch.ones(1))
    s = jnp.ones((1,), dtype=jnp.float32)
    # (The PyTorch forward also does `print(self.s)`; host-side side effect
    #  reproduced here in the wrapper.)
    print(s)

    # Force the Pallas path so the kernel itself is exercised at this toy size.
    y = lsq_quantize(x, s, force_pallas=True)
    jax.block_until_ready(y)
    ref = _lsq_reference(x, s)
    assert jnp.allclose(y, ref, atol=1e-6), "mismatch vs reference (main shape)"

    # Exercise the ragged row-grid path (rows % tm != 0, boundary block masked).
    x2 = jax.random.normal(jax.random.PRNGKey(1), (2, 12, 16, 16), dtype=jnp.float32) * 2.0
    y2 = lsq_quantize(x2, s, force_pallas=True, tile_rows=8)   # rows=12, tm=8, grid=2
    jax.block_until_ready(y2)
    assert jnp.allclose(y2, _lsq_reference(x2, s), atol=1e-6), "mismatch (ragged grid)"

    # Exercise the pad fallback path (numel not a multiple of 128).
    x3 = jax.random.normal(jax.random.PRNGKey(2), (3, 5, 7, 11), dtype=jnp.float32)
    y3 = lsq_quantize(x3, s, force_pallas=True)
    jax.block_until_ready(y3)
    assert jnp.allclose(y3, _lsq_reference(x3, s), atol=1e-6), "mismatch (pad fallback)"

    print("KERNEL_OK")
</pallas_src>

<mosaic_0001>
module attributes {stable_mosaic.version = 11 : i64} {
  func.func @_lsq_kernel(%arg0: i32, %arg1: memref<1xf32, #tpu.memory_space<smem>>, %arg2: memref<4x512xf32, #tpu.memory_space<vmem>>, %arg3: memref<4x512xf32, #tpu.memory_space<vmem>>) attributes {dimension_semantics = [#tpu.dimension_semantics<parallel>], iteration_bounds = array<i64: 1>, scalar_prefetch = 0 : i64, scratch_operands = 0 : i64, tpu.core_type = #tpu.core_type<tc>, window_params = [{transform_indices = @transform_0, window_bounds = array<i64: 1>}, {transform_indices = @transform_1, window_bounds = array<i64: 4, 512>}, {transform_indices = @transform_2, window_bounds = array<i64: 4, 512>}]} {
    %c0 = arith.constant 0 : index
    %0 = memref.load %arg1[%c0] : memref<1xf32, #tpu.memory_space<smem>>
    %c0_0 = arith.constant 0 : index
    %c0_1 = arith.constant 0 : index
    %1 = vector.load %arg2[%c0_0, %c0_1] : memref<4x512xf32, #tpu.memory_space<vmem>>, vector<4x512xf32>
    %2 = vector.broadcast %0 : f32 to vector<4x512xf32>
    %3 = arith.divf %1, %2 : vector<4x512xf32>
    %cst = arith.constant -1.280000e+02 : f32
    %cst_2 = arith.constant 1.270000e+02 : f32
    %4 = vector.broadcast %cst : f32 to vector<4x512xf32>
    %5 = arith.maximumf %4, %3 : vector<4x512xf32>
    %6 = vector.broadcast %cst_2 : f32 to vector<4x512xf32>
    %7 = arith.minimumf %6, %5 : vector<4x512xf32>
    %8 = math.roundeven %7 : vector<4x512xf32>
    %9 = vector.broadcast %0 : f32 to vector<4x512xf32>
    %10 = arith.mulf %8, %9 : vector<4x512xf32>
    %c0_3 = arith.constant 0 : index
    %c0_4 = arith.constant 0 : index
    %11 = vector.load %arg3[%c0_3, %c0_4] : memref<4x512xf32, #tpu.memory_space<vmem>>, vector<4x512xf32>
    tpu.vector_store %arg3[%c0_3, %c0_4], %10 {strides = array<i32>} : memref<4x512xf32, #tpu.memory_space<vmem>>, vector<4x512xf32>,
    return
  }
  func.func @transform_0(%arg0: i32) -> i32 {
    %c0_i32 = arith.constant 0 : i32
    %c0_i32_0 = arith.constant 0 : i32
    return %c0_i32 : i32
  }
  func.func @transform_1(%arg0: i32) -> (i32, i32) {
    %c0_i32 = arith.constant 0 : i32
    %c0_i32_0 = arith.constant 0 : i32
    return %arg0, %c0_i32 : i32, i32
  }
  func.func @transform_2(%arg0: i32) -> (i32, i32) {
    %c0_i32 = arith.constant 0 : i32
    %c0_i32_0 = arith.constant 0 : i32
    return %arg0, %c0_i32 : i32, i32
  }
}

</mosaic_0001>

<llo_original>
// kernel: tpu_custom_call.1
$region0: #{tpu_custom_call.1}
  #allocation0 [shape = 'u32[]', space=smem, size = 0x4, offset = 0x4, fixed_abs, tag = 'smem constant byte address 0x4 - core index']
  #allocation1 [shape = 'u32[144,128]{1,0:T(1,128)}', space=vmem, size = 0x12000, scoped, tag = 'internal scratch']
  #allocation2 [shape = 'f32[1]{0:T(128)S(6)}', space=smem, size = 0x200, scoped, tag = 'scoped memory for tpu_custom_call.1']
  %s0 = inlined_call_operand.<no memory space> [shape: f32[1], index: 0, kind: input, shape index: {}]
  %s1 = inlined_call_operand.hbm [shape: f32[4,512], index: 1, kind: input, shape index: {}]
  %s2 = inlined_call_operand.hbm [shape: f32[4,512], index: 2, kind: output, shape index: {}]
  %s3 = sld [smem:[#allocation0]]
  $region22: #{tpu_custom_call.1} parent=0
    _
  %s5 = ssub.s32 1, %s3
  %s6 = scalar_select 0, %s5, %s3
  %7 = sst [smem:[#allocation2]] %s0
  $region1: #{tpu_custom_call.1} parent=0
    #allocation3 [shape = 'u8[8192]{0}', space=vmem, size = 0x2000, scoped, tag = 'input window, operand 1, single buffered']
    #allocation4 [shape = 's32[1]{0}', space=sflag, size = 0x4, scoped, tag = 'scoped memory for tpu_custom_call.1']
    #allocation5 [shape = 's32[1]{0}', space=sflag, size = 0x4, scoped, tag = 'scoped memory for tpu_custom_call.1']
    #allocation6 [shape = 'u8[8192]{0}', space=vmem, size = 0x2000, scoped, tag = 'output window, operand 0, single buffered']
    %8 = vsyncpa [#allocation4], 0
    %9 = vsyncpa [#allocation5], 0
    // Predicated region
    $region2: #{tpu_custom_call.1} parent=1 // pred_check
      _
    $region3: #{tpu_custom_call.1} parent=1 // pred_check_branch
      %11 = sbr.rel (0) target = $region5
    $region4: #{tpu_custom_call.1} parent=1 // pred_region
      _
    $region5: #{tpu_custom_call.1} parent=1 // pred_fallthru
      _
    // Predicated region
    $region6: #{tpu_custom_call.1} parent=1 // pred_check
      _
    $region7: #{tpu_custom_call.1} parent=1 // pred_check_branch
      %13 = sbr.rel (0) target = $region9
    $region8: #{tpu_custom_call.1} parent=1 // pred_region
      %s15 = ssub.s32 256, 256
      %16 = vsyncadd [#allocation4], %s15
      %s18 = sshll.u32 [#allocation3], 4
      %s19 = int_to_ptr.vmem [resolvable:$true] %s18
      %21 = dma.hbm_to_vmem [thread:$0]  %s1, 256, %s19, [#allocation4]
    $region9: #{tpu_custom_call.1} parent=1 // pred_fallthru
      _
    // Predicated region
    $region10: #{tpu_custom_call.1} parent=1 // pred_check
      _
    $region11: #{tpu_custom_call.1} parent=1 // pred_check_branch
      %23 = sbr.rel (0) target = $region13
    $region12: #{tpu_custom_call.1} parent=1 // pred_region
      %24 = dma.done [#allocation4], 256
    $region13: #{tpu_custom_call.1} parent=1 // pred_fallthru
      _
    %s25 = sld [smem:[#allocation2]]
    %v26 = vld [vmem:[#allocation3] sm:$0xff]
    %v27 = vld [vmem:[#allocation3 + $0x8] sm:$0xff]
    %v28 = vstv %s25
    %v29 = vrcp.pop %v28
    %v30 = vmul.f32 %v26, %v29
    %v31 = vmul.f32 %v27, %v29
    %v32 = vmax.f32 %v30, -128.0
    %v33 = vmax.f32 %v31, -128.0
    %v34 = vmin.f32 %v32, 127.0
    %v35 = vmin.f32 %v33, 127.0
    %v36 = vround.ne.pseudo %v34
    %v37 = vround.ne.pseudo %v35
    %v38 = vmul.f32 %v36, %v28
    %v39 = vmul.f32 %v37, %v28
    %40 = vst [vmem:[#allocation6] sm:$0xff] %v38
    %41 = vst [vmem:[#allocation6 + $0x8] sm:$0xff] %v39
    // Predicated region
    $region14: #{tpu_custom_call.1} parent=1 // pred_check
      _
    $region15: #{tpu_custom_call.1} parent=1 // pred_check_branch
      %43 = sbr.rel (0) target = $region17
    $region16: #{tpu_custom_call.1} parent=1 // pred_region
      %s45 = ssub.s32 256, 256
      %46 = vsyncadd [#allocation5], %s45
      %s48 = sshll.u32 [#allocation6], 4
      %s49 = int_to_ptr.vmem [resolvable:$true] %s48
      %51 = dma.vmem_to_hbm [thread:$0]  %s49, 256, %s2, [#allocation5]
    $region17: #{tpu_custom_call.1} parent=1 // pred_fallthru
      _
    // Predicated region
    $region18: #{tpu_custom_call.1} parent=1 // pred_check
      _
    $region19: #{tpu_custom_call.1} parent=1 // pred_check_branch
      %53 = sbr.rel (0) target = $region21
    $region20: #{tpu_custom_call.1} parent=1 // pred_region
      %54 = dma.done [#allocation5], 256
    $region21: #{tpu_custom_call.1} parent=1 // pred_fallthru
      _
    %55 = vsyncpa [#allocation4], 1
    %56 = vsyncpa [#allocation5], 1

</llo_original>
